<compile_context>
chip_gen: v5e
topology: v5e:2x2
jax: 0.10.0
libtpu: 0.0.40
codegen_flags: <defaults>
</compile_context>

<pallas_src>
import functools

import jax
import jax.numpy as jnp
from jax.experimental import pallas as pl
from jax.experimental.pallas import tpu as pltpu

NUM_LAYERS = 4
EPS = 1e-5                       # PyG GraphNorm default eps
LANE = 128


def _round_up(x, m):
    return ((x + m - 1) // m) * m


def _cdiv(a, b):
    return (a + b - 1) // b


# ---------------------------------------------------------------------------
# Kernels
# ---------------------------------------------------------------------------

def aggregate_stats_kernel(a_ref, hw_ref, b_ref, onehot_t_ref,
                           hconv_ref, stats_ref, acc_ref, *, d_pad):
    """K-tiled GCN aggregation + per-graph partial GraphNorm statistics.

    grid = (dst tiles [parallel], src tiles [arbitrary])
    a_ref        : [TILE_N, TILE_K] bf16  normalized-adjacency tile
    hw_ref       : [TILE_K, Dp]     bf16  (H @ W) source-node tile
    b_ref        : [1, Dp]          f32   GCN bias
    onehot_t_ref : [Gp, TILE_N]     f32   transposed graph membership (dst tile)
    hconv_ref    : [TILE_N, Dp]     f32   out: A_hat @ (H W) + b
    stats_ref    : [Gp, 2*Dp]       f32   out: per-graph [sum(h), sum(h^2)] partials
    acc_ref      : [TILE_N, Dp]     f32   VMEM accumulator scratch
    """
    k = pl.program_id(1)

    @pl.when(k == 0)
    def _():
        acc_ref[...] = jnp.zeros_like(acc_ref)

    acc_ref[...] += jnp.dot(a_ref[...], hw_ref[...],
                            preferred_element_type=jnp.float32)

    @pl.when(k == pl.num_programs(1) - 1)
    def _():
        hconv = acc_ref[...] + b_ref[...]
        hconv_ref[...] = hconv
        # Per-graph sums via small MXU contractions (standard NN matmuls with a
        # pre-transposed one-hot) instead of a per-graph VPU/XLU loop.
        oh_t = onehot_t_ref[...]                                    # [Gp, TILE_N]
        stats_ref[:, :d_pad] = jnp.dot(oh_t, hconv,
                                       preferred_element_type=jnp.float32)
        stats_ref[:, d_pad:] = jnp.dot(oh_t, hconv * hconv,
                                       preferred_element_type=jnp.float32)


def norm_relu_w_kernel(hconv_ref, onehot_ref, scale_ref, shift_ref, w_ref,
                       out_ref):
    """GraphNorm (folded per-graph scale/shift) + ReLU + next layer's weight.

    out = bf16( relu(hconv * scale[g(n)] + shift[g(n)]) @ W_next )
    """
    onehot = onehot_ref[...]                                        # [TILE_N, Gp]
    scale = jnp.dot(onehot, scale_ref[...], preferred_element_type=jnp.float32)
    shift = jnp.dot(onehot, shift_ref[...], preferred_element_type=jnp.float32)
    y = jnp.maximum(hconv_ref[...] * scale + shift, 0.0)
    out_ref[...] = jnp.dot(y.astype(jnp.bfloat16), w_ref[...],
                           preferred_element_type=jnp.float32
                           ).astype(jnp.bfloat16)


def norm_relu_kernel(hconv_ref, onehot_ref, scale_ref, shift_ref, out_ref):
    """Final layer: GraphNorm + ReLU (f32 output, no fused weight)."""
    onehot = onehot_ref[...]
    scale = jnp.dot(onehot, scale_ref[...], preferred_element_type=jnp.float32)
    shift = jnp.dot(onehot, shift_ref[...], preferred_element_type=jnp.float32)
    out_ref[...] = jnp.maximum(hconv_ref[...] * scale + shift, 0.0)


# ---------------------------------------------------------------------------
# Host-side helpers
# ---------------------------------------------------------------------------

def build_norm_adj(edge_index, edge_weight, num_nodes, out_size=None):
    """PyG gcn_norm(add_self_loops=True) as a dense [out, out] f32 matrix
    (A[dst, src] = deg^-1/2[src] * w * deg^-1/2[dst]), built directly at the
    padded size so no separate pad pass is needed."""
    if out_size is None:
        out_size = num_nodes
    src, dst = edge_index[0], edge_index[1]
    loops = jnp.arange(num_nodes, dtype=src.dtype)
    src = jnp.concatenate([src, loops])
    dst = jnp.concatenate([dst, loops])
    w = jnp.concatenate([edge_weight.astype(jnp.float32),
                         jnp.ones((num_nodes,), jnp.float32)])
    deg = jnp.zeros((num_nodes,), jnp.float32).at[dst].add(w)
    dinv = jnp.where(deg > 0, 1.0 / jnp.sqrt(deg), 0.0)
    norm = dinv[src] * w * dinv[dst]
    return jnp.zeros((out_size, out_size), jnp.float32).at[dst, src].add(norm)


def _choose_tiles(n):
    """Pick (tile_n, tile_k, n_pad).  tile_n == tile_k always divides n_pad and
    is either a multiple of 128 lanes or equal to n_pad (BlockSpec legality for
    the transposed one-hot / adjacency lane dims)."""
    if n <= 256:
        tile_n = _round_up(max(n, 16), 16)          # single dst tile
    elif n < 1024:
        tile_n = _round_up(_cdiv(n, 2), 128)        # two dst tiles -> both v7x TCs
    else:
        tile_n = 512                                # big-graph steady state
    n_pad = _round_up(n, tile_n)
    return tile_n, tile_n, n_pad


@functools.partial(jax.jit, static_argnames=("num_graphs",))
def gnn_forward(node, edge_index, edge_attr, batch, num_graphs, params):
    """node: [N, D] f32, edge_index: [2, E] i32, edge_attr: [E] f32 (edge weights),
    batch: [N] i32 per-node graph id (the module's `batch_ptr` argument)."""
    W, b, gamma, beta, ms = params
    N, D = node.shape
    L = W.shape[0]
    G = num_graphs
    Gp = _round_up(max(G, 1), 8)
    Dp = _round_up(D, LANE)
    tile_n, tile_k, n_pad = _choose_tiles(N)
    nt = n_pad // tile_n
    nk = n_pad // tile_k

    # ---- padded / lane-dense operands --------------------------------------
    a_bf = build_norm_adj(edge_index, edge_attr, N,
                          out_size=n_pad).astype(jnp.bfloat16)

    onehot = (batch[:, None] == jnp.arange(Gp)[None, :]).astype(jnp.float32)
    onehot = jnp.pad(onehot, ((0, n_pad - N), (0, 0)))      # padded rows all-zero
    onehot_t = onehot.T                                      # [Gp, n_pad]
    counts = jnp.sum(onehot, axis=0)[:, None]                # [Gp, 1]
    inv_cnt = 1.0 / jnp.maximum(counts, 1.0)                 # empty-graph guard

    x = jnp.pad(node, ((0, n_pad - N), (0, Dp - D)))

    pad_p = ((0, 0), (0, 0), (0, Dp - D))
    W_bf = jnp.pad(W, ((0, 0), (0, Dp - D), (0, Dp - D))).astype(jnp.bfloat16)
    b_p = jnp.pad(b, pad_p)
    gamma_p = jnp.pad(gamma, pad_p)   # zero-pad -> padded lanes stay exactly 0
    beta_p = jnp.pad(beta, pad_p)
    ms_p = jnp.pad(ms, pad_p)

    # ---- VMEM budget derived from the actual tile sizes ---------------------
    agg_vmem = (2 * (tile_n * tile_k * 2 + tile_k * Dp * 2 + Dp * 4
                     + Gp * tile_n * 4 + tile_n * Dp * 4 + Gp * 2 * Dp * 4)
                + tile_n * Dp * 4)
    norm_vmem = 2 * (tile_n * Dp * 4 + tile_n * Gp * 4 + 2 * Gp * Dp * 4
                     + Dp * Dp * 2 + tile_n * Dp * 4)
    vmem_limit = int(min(64 * 2 ** 20,
                         max(32 * 2 ** 20, 4 * max(agg_vmem, norm_vmem))))

    agg_cp = pltpu.CompilerParams(
        dimension_semantics=("parallel", "arbitrary"),
        vmem_limit_bytes=vmem_limit)
    norm_cp = pltpu.CompilerParams(
        dimension_semantics=("parallel",),
        vmem_limit_bytes=vmem_limit)

    agg_cost = pl.CostEstimate(
        flops=2 * n_pad * n_pad * Dp + 4 * n_pad * Gp * Dp,
        transcendentals=0,
        bytes_accessed=(n_pad * n_pad * 2 + nt * n_pad * Dp * 2
                        + n_pad * Dp * 4 + nt * Gp * 2 * Dp * 4))
    norm_w_cost = pl.CostEstimate(
        flops=2 * n_pad * Dp * Dp + 4 * n_pad * Gp * Dp + 3 * n_pad * Dp,
        transcendentals=0,
        bytes_accessed=n_pad * Dp * 4 + n_pad * Dp * 2 + Dp * Dp * 2)
    norm_f_cost = pl.CostEstimate(
        flops=4 * n_pad * Gp * Dp + 3 * n_pad * Dp,
        transcendentals=0,
        bytes_accessed=2 * n_pad * Dp * 4)

    agg_call = pl.pallas_call(
        functools.partial(aggregate_stats_kernel, d_pad=Dp),
        grid=(nt, nk),
        in_specs=[
            pl.BlockSpec((tile_n, tile_k), lambda i, k: (i, k)),      # A_hat tile
            pl.BlockSpec((tile_k, Dp), lambda i, k: (k, 0)),          # (H @ W) tile
            pl.BlockSpec((1, Dp), lambda i, k: (0, 0)),               # bias
            pl.BlockSpec((Gp, tile_n), lambda i, k: (0, i)),          # one-hot^T
        ],
        out_specs=[
            pl.BlockSpec((tile_n, Dp), lambda i, k: (i, 0)),          # hconv
            pl.BlockSpec((None, Gp, 2 * Dp), lambda i, k: (i, 0, 0)), # stats partials
        ],
        out_shape=[
            jax.ShapeDtypeStruct((n_pad, Dp), jnp.float32),
            jax.ShapeDtypeStruct((nt, Gp, 2 * Dp), jnp.float32),
        ],
        scratch_shapes=[pltpu.VMEM((tile_n, Dp), jnp.float32)],
        compiler_params=agg_cp,
        cost_estimate=agg_cost,
    )

    norm_w_call = pl.pallas_call(
        norm_relu_w_kernel,
        grid=(nt,),
        in_specs=[
            pl.BlockSpec((tile_n, Dp), lambda i: (i, 0)),             # hconv
            pl.BlockSpec((tile_n, Gp), lambda i: (i, 0)),             # one-hot
            pl.BlockSpec((Gp, Dp), lambda i: (0, 0)),                 # scale
            pl.BlockSpec((Gp, Dp), lambda i: (0, 0)),                 # shift
            pl.BlockSpec((Dp, Dp), lambda i: (0, 0)),                 # W_next (bf16)
        ],
        out_specs=pl.BlockSpec((tile_n, Dp), lambda i: (i, 0)),
        out_shape=jax.ShapeDtypeStruct((n_pad, Dp), jnp.bfloat16),
        compiler_params=norm_cp,
        cost_estimate=norm_w_cost,
    )

    norm_final_call = pl.pallas_call(
        norm_relu_kernel,
        grid=(nt,),
        in_specs=[
            pl.BlockSpec((tile_n, Dp), lambda i: (i, 0)),
            pl.BlockSpec((tile_n, Gp), lambda i: (i, 0)),
            pl.BlockSpec((Gp, Dp), lambda i: (0, 0)),
            pl.BlockSpec((Gp, Dp), lambda i: (0, 0)),
        ],
        out_specs=pl.BlockSpec((tile_n, Dp), lambda i: (i, 0)),
        out_shape=jax.ShapeDtypeStruct((n_pad, Dp), jnp.float32),
        compiler_params=norm_cp,
        cost_estimate=norm_f_cost,
    )

    # First layer's H @ W in plain JAX (one small matmul); every subsequent
    # H @ W is fused into norm_relu_w_kernel and fed back as bf16.
    hw = jnp.dot(x.astype(jnp.bfloat16), W_bf[0],
                 preferred_element_type=jnp.float32).astype(jnp.bfloat16)

    h_out = None
    for l in range(L):
        hconv, stats_part = agg_call(a_bf, hw, b_p[l], onehot_t)

        # ---- GraphNorm finalize on tiny [Gp, Dp] tensors (plain JAX, f32) ---
        stats = jnp.sum(stats_part, axis=0)                  # [Gp, 2*Dp]
        mean = stats[:, :Dp] * inv_cnt                       # [Gp, Dp]
        ex2 = stats[:, Dp:] * inv_cnt
        msl = ms_p[l]                                        # [1, Dp]
        var = jnp.maximum(ex2 - msl * (2.0 - msl) * mean * mean, 0.0)
        inv_std = jax.lax.rsqrt(var + EPS)
        scale_g = gamma_p[l] * inv_std                       # [Gp, Dp]
        shift_g = beta_p[l] - scale_g * (msl * mean)

        if l + 1 < L:
            hw = norm_w_call(hconv, onehot, scale_g, shift_g, W_bf[l + 1])
        else:
            h_out = norm_final_call(hconv, onehot, scale_g, shift_g)

    return h_out[:N, :D]


# ---------------------------------------------------------------------------
# References & test
# ---------------------------------------------------------------------------

def gnn_reference(node, edge_index, edge_attr, batch, num_graphs, params, *,
                  bf16_matmuls=False):
    """Pure-JAX reference of the same forward.

    bf16_matmuls=False : faithful f32 forward (PyTorch semantics).
    bf16_matmuls=True  : matched-precision reference (bf16 MXU inputs, f32
                         accumulation, single-pass variance) for a tight check.
    """
    W, b, gamma, beta, ms = params
    N, _ = node.shape
    a_hat = build_norm_adj(edge_index, edge_attr, N)
    counts = jnp.maximum(
        jax.ops.segment_sum(jnp.ones((N,), jnp.float32), batch, num_graphs), 1.0)

    def mm(x, y):
        if bf16_matmuls:
            return jnp.dot(x.astype(jnp.bfloat16), y.astype(jnp.bfloat16),
                           preferred_element_type=jnp.float32)
        return jnp.dot(x, y)

    h = node
    for l in range(W.shape[0]):
        hconv = mm(a_hat, mm(h, W[l])) + b[l]      # X @ W first, then propagate
        mean_g = jax.ops.segment_sum(hconv, batch, num_graphs) / counts[:, None]
        centered = hconv - mean_g[batch] * ms[l]
        if bf16_matmuls:
            ex2 = jax.ops.segment_sum(hconv * hconv, batch, num_graphs) / counts[:, None]
            var_g = jnp.maximum(ex2 - ms[l] * (2.0 - ms[l]) * mean_g * mean_g, 0.0)
        else:
            var_g = jax.ops.segment_sum(centered * centered, batch, num_graphs) / counts[:, None]
        inv_std = jax.lax.rsqrt(var_g + EPS)
        h = jnp.maximum(gamma[l] * centered * inv_std[batch] + beta[l], 0.0)
    return h


def init_params(key, hidden_dim, num_layers=NUM_LAYERS):
    # GCNConv: Linear weight glorot-uniform, bias zeros.
    # GraphNorm: weight=1, bias=0, mean_scale=1 (PyG defaults).
    limit = (6.0 / (hidden_dim + hidden_dim)) ** 0.5
    W = jax.random.uniform(key, (num_layers, hidden_dim, hidden_dim),
                           jnp.float32, -limit, limit)
    b = jnp.zeros((num_layers, 1, hidden_dim), jnp.float32)
    gamma = jnp.ones((num_layers, 1, hidden_dim), jnp.float32)
    beta = jnp.zeros((num_layers, 1, hidden_dim), jnp.float32)
    ms = jnp.ones((num_layers, 1, hidden_dim), jnp.float32)
    return (W, b, gamma, beta, ms)


if __name__ == "__main__":
    key = jax.random.PRNGKey(0)
    k_node, k_edge, k_w = jax.random.split(key, 3)

    hidden_dim = 32
    nodes_per_graph = 16
    num_graphs = 2
    N = nodes_per_graph * num_graphs

    # Bidirectional ring edges within each graph (deterministic structure).
    src, dst = [], []
    for g in range(num_graphs):
        base = g * nodes_per_graph
        for i in range(nodes_per_graph):
            j = (i + 1) % nodes_per_graph
            src += [base + i, base + j]
            dst += [base + j, base + i]
    edge_index = jnp.array([src, dst], dtype=jnp.int32)              # [2, E]
    E = edge_index.shape[1]

    node = jax.random.normal(k_node, (N, hidden_dim), jnp.float32)   # [N, D]
    edge_attr = jax.random.uniform(k_edge, (E,), jnp.float32, 0.5, 1.5)
    batch_ptr = jnp.repeat(jnp.arange(num_graphs, dtype=jnp.int32),
                           nodes_per_graph)                          # per-node graph id

    params = init_params(k_w, hidden_dim)

    out = gnn_forward(node, edge_index, edge_attr, batch_ptr, num_graphs, params)
    out = jax.block_until_ready(out)

    ref_matched = gnn_reference(node, edge_index, edge_attr, batch_ptr,
                                num_graphs, params, bf16_matmuls=True)
    ref_f32 = gnn_reference(node, edge_index, edge_attr, batch_ptr,
                            num_graphs, params, bf16_matmuls=False)

    assert out.shape == (N, hidden_dim)
    assert jnp.all(jnp.isfinite(out))
    # Implementation correctness at matched (bf16-MXU) precision.
    assert jnp.allclose(out, ref_matched, atol=2e-3, rtol=2e-3)
    # bf16 MXU inputs shift results at the ~1e-2 level vs the pure-f32 forward;
    # bound the drift generously.
    assert float(jnp.max(jnp.abs(out - ref_f32))) < 0.5

    print("KERNEL_OK")
</pallas_src>

<mosaic_0001>
module attributes {stable_mosaic.version = 11 : i64} {
  func.func @aggregate_stats_kernel(%arg0: i32, %arg1: i32, %arg2: memref<32x32xbf16, #tpu.memory_space<vmem>>, %arg3: memref<32x128xbf16, #tpu.memory_space<vmem>>, %arg4: memref<1x128xf32, #tpu.memory_space<vmem>>, %arg5: memref<8x32xf32, #tpu.memory_space<vmem>>, %arg6: memref<32x128xf32, #tpu.memory_space<vmem>>, %arg7: memref<1x8x256xf32, #tpu.memory_space<vmem>>, %arg8: memref<32x128xf32, #tpu.memory_space<vmem>>) attributes {dimension_semantics = [#tpu.dimension_semantics<parallel>, #tpu.dimension_semantics<arbitrary>], iteration_bounds = array<i64: 1, 1>, scalar_prefetch = 0 : i64, scratch_operands = 1 : i64, tpu.core_type = #tpu.core_type<tc>, window_params = [{transform_indices = @transform_0, window_bounds = array<i64: 32, 32>}, {transform_indices = @transform_1, window_bounds = array<i64: 32, 128>}, {pipeline_mode = #tpu.pipeline_mode<synchronous>, transform_indices = @transform_2, window_bounds = array<i64: 1, 128>}, {transform_indices = @transform_3, window_bounds = array<i64: 8, 32>}, {transform_indices = @transform_4, window_bounds = array<i64: 32, 128>}, {transform_indices = @transform_5, window_bounds = array<i64: 1, 8, 256>}]} {
    %c0_i32 = arith.constant 0 : i32
    %0 = arith.cmpi eq, %arg1, %c0_i32 : i32
    %1 = arith.extui %0 : i1 to i32
    %c0_i32_0 = arith.constant 0 : i32
    %2 = arith.cmpi ne, %1, %c0_i32_0 : i32
    scf.if %2 {
      %cst_10 = arith.constant 0.000000e+00 : f32
      %12 = vector.broadcast %cst_10 : f32 to vector<32x128xf32>
      %c0_11 = arith.constant 0 : index
      %c0_12 = arith.constant 0 : index
      %13 = vector.load %arg8[%c0_11, %c0_12] : memref<32x128xf32, #tpu.memory_space<vmem>>, vector<32x128xf32>
      tpu.vector_store %arg8[%c0_11, %c0_12], %12 {strides = array<i32>} : memref<32x128xf32, #tpu.memory_space<vmem>>, vector<32x128xf32>,
    } else {
    }
    %c0 = arith.constant 0 : index
    %c0_1 = arith.constant 0 : index
    %3 = vector.load %arg8[%c0, %c0_1] : memref<32x128xf32, #tpu.memory_space<vmem>>, vector<32x128xf32>
    %c0_2 = arith.constant 0 : index
    %c0_3 = arith.constant 0 : index
    %4 = vector.load %arg2[%c0_2, %c0_3] : memref<32x32xbf16, #tpu.memory_space<vmem>>, vector<32x32xbf16>
    %c0_4 = arith.constant 0 : index
    %c0_5 = arith.constant 0 : index
    %5 = vector.load %arg3[%c0_4, %c0_5] : memref<32x128xbf16, #tpu.memory_space<vmem>>, vector<32x128xbf16>
    %cst = arith.constant dense<0.000000e+00> : vector<32x128xf32>
    %6 = tpu.matmul %4, %5, %cst {dimension_numbers = #tpu.dot_dimension_numbers<[1], [0], [0], [1], [0, 0, 1, 1], [], []>} : vector<32x32xbf16>, vector<32x128xbf16>, vector<32x128xf32> -> vector<32x128xf32>
    %7 = arith.addf %3, %6 : vector<32x128xf32>
    %c0_6 = arith.constant 0 : index
    %c0_7 = arith.constant 0 : index
    %8 = vector.load %arg8[%c0_6, %c0_7] : memref<32x128xf32, #tpu.memory_space<vmem>>, vector<32x128xf32>
    tpu.vector_store %arg8[%c0_6, %c0_7], %7 {strides = array<i32>} : memref<32x128xf32, #tpu.memory_space<vmem>>, vector<32x128xf32>,
    %c0_i32_8 = arith.constant 0 : i32
    %9 = arith.cmpi eq, %arg1, %c0_i32_8 : i32
    %10 = arith.extui %9 : i1 to i32
    %c0_i32_9 = arith.constant 0 : i32
    %11 = arith.cmpi ne, %10, %c0_i32_9 : i32
    scf.if %11 {
      %c0_10 = arith.constant 0 : index
      %c0_11 = arith.constant 0 : index
      %12 = vector.load %arg8[%c0_10, %c0_11] : memref<32x128xf32, #tpu.memory_space<vmem>>, vector<32x128xf32>
      %c0_12 = arith.constant 0 : index
      %c0_13 = arith.constant 0 : index
      %13 = vector.load %arg4[%c0_12, %c0_13] : memref<1x128xf32, #tpu.memory_space<vmem>>, vector<1x128xf32>
      %14 = vector.broadcast %13 : vector<1x128xf32> to vector<32x128xf32>
      %15 = arith.addf %12, %14 : vector<32x128xf32>
      %c0_14 = arith.constant 0 : index
      %c0_15 = arith.constant 0 : index
      %16 = vector.load %arg6[%c0_14, %c0_15] : memref<32x128xf32, #tpu.memory_space<vmem>>, vector<32x128xf32>
      tpu.vector_store %arg6[%c0_14, %c0_15], %15 {strides = array<i32>} : memref<32x128xf32, #tpu.memory_space<vmem>>, vector<32x128xf32>,
      %c0_16 = arith.constant 0 : index
      %c0_17 = arith.constant 0 : index
      %17 = vector.load %arg5[%c0_16, %c0_17] : memref<8x32xf32, #tpu.memory_space<vmem>>, vector<8x32xf32>
      %cst_18 = arith.constant dense<0.000000e+00> : vector<8x128xf32>
      %18 = tpu.matmul %17, %15, %cst_18 {dimension_numbers = #tpu.dot_dimension_numbers<[1], [0], [0], [1], [0, 0, 1, 1], [], []>} : vector<8x32xf32>, vector<32x128xf32>, vector<8x128xf32> -> vector<8x128xf32>
      %c0_19 = arith.constant 0 : index
      %c0_20 = arith.constant 0 : index
      %c0_21 = arith.constant 0 : index
      %19 = vector.load %arg7[%c0_19, %c0_20, %c0_21] : memref<1x8x256xf32, #tpu.memory_space<vmem>>, vector<1x8x128xf32>
      %20 = vector.shape_cast %19 : vector<1x8x128xf32> to vector<8x128xf32>
      %21 = vector.shape_cast %18 : vector<8x128xf32> to vector<1x8x128xf32>
      tpu.vector_store %arg7[%c0_19, %c0_20, %c0_21], %21 {strides = array<i32>} : memref<1x8x256xf32, #tpu.memory_space<vmem>>, vector<1x8x128xf32>,
      %22 = arith.mulf %15, %15 : vector<32x128xf32>
      %cst_22 = arith.constant dense<0.000000e+00> : vector<8x128xf32>
      %23 = tpu.matmul %17, %22, %cst_22 {dimension_numbers = #tpu.dot_dimension_numbers<[1], [0], [0], [1], [0, 0, 1, 1], [], []>} : vector<8x32xf32>, vector<32x128xf32>, vector<8x128xf32> -> vector<8x128xf32>
      %c0_23 = arith.constant 0 : index
      %c0_24 = arith.constant 0 : index
      %c128 = arith.constant 128 : index
      %24 = vector.load %arg7[%c0_23, %c0_24, %c128] : memref<1x8x256xf32, #tpu.memory_space<vmem>>, vector<1x8x128xf32>
      %25 = vector.shape_cast %24 : vector<1x8x128xf32> to vector<8x128xf32>
      %26 = vector.shape_cast %23 : vector<8x128xf32> to vector<1x8x128xf32>
      tpu.vector_store %arg7[%c0_23, %c0_24, %c128], %26 {strides = array<i32>} : memref<1x8x256xf32, #tpu.memory_space<vmem>>, vector<1x8x128xf32>,
    } else {
    }
    return
  }
  func.func @transform_0(%arg0: i32, %arg1: i32) -> (i32, i32) {
    %c0_i32 = arith.constant 0 : i32
    return %arg0, %arg1 : i32, i32
  }
  func.func @transform_1(%arg0: i32, %arg1: i32) -> (i32, i32) {
    %c0_i32 = arith.constant 0 : i32
    %c0_i32_0 = arith.constant 0 : i32
    return %arg1, %c0_i32 : i32, i32
  }
  func.func @transform_2(%arg0: i32, %arg1: i32) -> (i32, i32) {
    %c0_i32 = arith.constant 0 : i32
    %c0_i32_0 = arith.constant 0 : i32
    %c0_i32_1 = arith.constant 0 : i32
    return %c0_i32, %c0_i32_0 : i32, i32
  }
  func.func @transform_3(%arg0: i32, %arg1: i32) -> (i32, i32) {
    %c0_i32 = arith.constant 0 : i32
    %c0_i32_0 = arith.constant 0 : i32
    return %c0_i32, %arg0 : i32, i32
  }
  func.func @transform_4(%arg0: i32, %arg1: i32) -> (i32, i32) {
    %c0_i32 = arith.constant 0 : i32
    %c0_i32_0 = arith.constant 0 : i32
    return %arg0, %c0_i32 : i32, i32
  }
  func.func @transform_5(%arg0: i32, %arg1: i32) -> (i32, i32, i32) {
    %c0_i32 = arith.constant 0 : i32
    %c0_i32_0 = arith.constant 0 : i32
    %c0_i32_1 = arith.constant 0 : i32
    return %arg0, %c0_i32, %c0_i32_0 : i32, i32, i32
  }
}

module attributes {stable_mosaic.version = 11 : i64} {
  func.func @norm_relu_kernel(%arg0: i32, %arg1: memref<32x128xf32, #tpu.memory_space<vmem>>, %arg2: memref<32x8xf32, #tpu.memory_space<vmem>>, %arg3: memref<8x128xf32, #tpu.memory_space<vmem>>, %arg4: memref<8x128xf32, #tpu.memory_space<vmem>>, %arg5: memref<32x128xf32, #tpu.memory_space<vmem>>) attributes {dimension_semantics = [#tpu.dimension_semantics<parallel>], iteration_bounds = array<i64: 1>, scalar_prefetch = 0 : i64, scratch_operands = 0 : i64, tpu.core_type = #tpu.core_type<tc>, window_params = [{transform_indices = @transform_0, window_bounds = array<i64: 32, 128>}, {transform_indices = @transform_1, window_bounds = array<i64: 32, 8>}, {pipeline_mode = #tpu.pipeline_mode<synchronous>, transform_indices = @transform_2, window_bounds = array<i64: 8, 128>}, {pipeline_mode = #tpu.pipeline_mode<synchronous>, transform_indices = @transform_3, window_bounds = array<i64: 8, 128>}, {transform_indices = @transform_4, window_bounds = array<i64: 32, 128>}]} {
    %c0 = arith.constant 0 : index
    %c0_0 = arith.constant 0 : index
    %0 = vector.load %arg2[%c0, %c0_0] : memref<32x8xf32, #tpu.memory_space<vmem>>, vector<32x8xf32>
    %c0_1 = arith.constant 0 : index
    %c0_2 = arith.constant 0 : index
    %1 = vector.load %arg3[%c0_1, %c0_2] : memref<8x128xf32, #tpu.memory_space<vmem>>, vector<8x128xf32>
    %cst = arith.constant dense<0.000000e+00> : vector<32x128xf32>
    %2 = tpu.matmul %0, %1, %cst {dimension_numbers = #tpu.dot_dimension_numbers<[1], [0], [0], [1], [0, 0, 1, 1], [], []>} : vector<32x8xf32>, vector<8x128xf32>, vector<32x128xf32> -> vector<32x128xf32>
    %c0_3 = arith.constant 0 : index
    %c0_4 = arith.constant 0 : index
    %3 = vector.load %arg4[%c0_3, %c0_4] : memref<8x128xf32, #tpu.memory_space<vmem>>, vector<8x128xf32>
    %cst_5 = arith.constant dense<0.000000e+00> : vector<32x128xf32>
    %4 = tpu.matmul %0, %3, %cst_5 {dimension_numbers = #tpu.dot_dimension_numbers<[1], [0], [0], [1], [0, 0, 1, 1], [], []>} : vector<32x8xf32>, vector<8x128xf32>, vector<32x128xf32> -> vector<32x128xf32>
    %c0_6 = arith.constant 0 : index
    %c0_7 = arith.constant 0 : index
    %5 = vector.load %arg1[%c0_6, %c0_7] : memref<32x128xf32, #tpu.memory_space<vmem>>, vector<32x128xf32>
    %6 = arith.mulf %5, %2 : vector<32x128xf32>
    %7 = arith.addf %6, %4 : vector<32x128xf32>
    %cst_8 = arith.constant 0.000000e+00 : f32
    %8 = vector.broadcast %cst_8 : f32 to vector<32x128xf32>
    %9 = arith.maximumf %7, %8 : vector<32x128xf32>
    %c0_9 = arith.constant 0 : index
    %c0_10 = arith.constant 0 : index
    %10 = vector.load %arg5[%c0_9, %c0_10] : memref<32x128xf32, #tpu.memory_space<vmem>>, vector<32x128xf32>
    tpu.vector_store %arg5[%c0_9, %c0_10], %9 {strides = array<i32>} : memref<32x128xf32, #tpu.memory_space<vmem>>, vector<32x128xf32>,
    return
  }
  func.func @transform_0(%arg0: i32) -> (i32, i32) {
    %c0_i32 = arith.constant 0 : i32
    %c0_i32_0 = arith.constant 0 : i32
    return %arg0, %c0_i32 : i32, i32
  }
  func.func @transform_1(%arg0: i32) -> (i32, i32) {
    %c0_i32 = arith.constant 0 : i32
    %c0_i32_0 = arith.constant 0 : i32
    return %arg0, %c0_i32 : i32, i32
  }
  func.func @transform_2(%arg0: i32) -> (i32, i32) {
    %c0_i32 = arith.constant 0 : i32
    %c0_i32_0 = arith.constant 0 : i32
    %c0_i32_1 = arith.constant 0 : i32
    return %c0_i32, %c0_i32_0 : i32, i32
  }
  func.func @transform_3(%arg0: i32) -> (i32, i32) {
    %c0_i32 = arith.constant 0 : i32
    %c0_i32_0 = arith.constant 0 : i32
    %c0_i32_1 = arith.constant 0 : i32
    return %c0_i32, %c0_i32_0 : i32, i32
  }
  func.func @transform_4(%arg0: i32) -> (i32, i32) {
    %c0_i32 = arith.constant 0 : i32
    %c0_i32_0 = arith.constant 0 : i32
    return %arg0, %c0_i32 : i32, i32
  }
}

module attributes {stable_mosaic.version = 11 : i64} {
  func.func @norm_relu_w_kernel(%arg0: i32, %arg1: memref<32x128xf32, #tpu.memory_space<vmem>>, %arg2: memref<32x8xf32, #tpu.memory_space<vmem>>, %arg3: memref<8x128xf32, #tpu.memory_space<vmem>>, %arg4: memref<8x128xf32, #tpu.memory_space<vmem>>, %arg5: memref<128x128xbf16, #tpu.memory_space<vmem>>, %arg6: memref<32x128xbf16, #tpu.memory_space<vmem>>) attributes {dimension_semantics = [#tpu.dimension_semantics<parallel>], iteration_bounds = array<i64: 1>, scalar_prefetch = 0 : i64, scratch_operands = 0 : i64, tpu.core_type = #tpu.core_type<tc>, window_params = [{transform_indices = @transform_0, window_bounds = array<i64: 32, 128>}, {transform_indices = @transform_1, window_bounds = array<i64: 32, 8>}, {pipeline_mode = #tpu.pipeline_mode<synchronous>, transform_indices = @transform_2, window_bounds = array<i64: 8, 128>}, {pipeline_mode = #tpu.pipeline_mode<synchronous>, transform_indices = @transform_3, window_bounds = array<i64: 8, 128>}, {pipeline_mode = #tpu.pipeline_mode<synchronous>, transform_indices = @transform_4, window_bounds = array<i64: 128, 128>}, {transform_indices = @transform_5, window_bounds = array<i64: 32, 128>}]} {
    %c0 = arith.constant 0 : index
    %c0_0 = arith.constant 0 : index
    %0 = vector.load %arg2[%c0, %c0_0] : memref<32x8xf32, #tpu.memory_space<vmem>>, vector<32x8xf32>
    %c0_1 = arith.constant 0 : index
    %c0_2 = arith.constant 0 : index
    %1 = vector.load %arg3[%c0_1, %c0_2] : memref<8x128xf32, #tpu.memory_space<vmem>>, vector<8x128xf32>
    %cst = arith.constant dense<0.000000e+00> : vector<32x128xf32>
    %2 = tpu.matmul %0, %1, %cst {dimension_numbers = #tpu.dot_dimension_numbers<[1], [0], [0], [1], [0, 0, 1, 1], [], []>} : vector<32x8xf32>, vector<8x128xf32>, vector<32x128xf32> -> vector<32x128xf32>
    %c0_3 = arith.constant 0 : index
    %c0_4 = arith.constant 0 : index
    %3 = vector.load %arg4[%c0_3, %c0_4] : memref<8x128xf32, #tpu.memory_space<vmem>>, vector<8x128xf32>
    %cst_5 = arith.constant dense<0.000000e+00> : vector<32x128xf32>
    %4 = tpu.matmul %0, %3, %cst_5 {dimension_numbers = #tpu.dot_dimension_numbers<[1], [0], [0], [1], [0, 0, 1, 1], [], []>} : vector<32x8xf32>, vector<8x128xf32>, vector<32x128xf32> -> vector<32x128xf32>
    %c0_6 = arith.constant 0 : index
    %c0_7 = arith.constant 0 : index
    %5 = vector.load %arg1[%c0_6, %c0_7] : memref<32x128xf32, #tpu.memory_space<vmem>>, vector<32x128xf32>
    %6 = arith.mulf %5, %2 : vector<32x128xf32>
    %7 = arith.addf %6, %4 : vector<32x128xf32>
    %cst_8 = arith.constant 0.000000e+00 : f32
    %8 = vector.broadcast %cst_8 : f32 to vector<32x128xf32>
    %9 = arith.maximumf %7, %8 : vector<32x128xf32>
    %10 = arith.truncf %9 : vector<32x128xf32> to vector<32x128xbf16>
    %c0_9 = arith.constant 0 : index
    %c0_10 = arith.constant 0 : index
    %11 = vector.load %arg5[%c0_9, %c0_10] : memref<128x128xbf16, #tpu.memory_space<vmem>>, vector<128x128xbf16>
    %cst_11 = arith.constant dense<0.000000e+00> : vector<32x128xf32>
    %12 = tpu.matmul %10, %11, %cst_11 {dimension_numbers = #tpu.dot_dimension_numbers<[1], [0], [0], [1], [0, 0, 1, 1], [], []>} : vector<32x128xbf16>, vector<128x128xbf16>, vector<32x128xf32> -> vector<32x128xf32>
    %13 = arith.truncf %12 : vector<32x128xf32> to vector<32x128xbf16>
    %c0_12 = arith.constant 0 : index
    %c0_13 = arith.constant 0 : index
    %14 = vector.load %arg6[%c0_12, %c0_13] : memref<32x128xbf16, #tpu.memory_space<vmem>>, vector<32x128xbf16>
    tpu.vector_store %arg6[%c0_12, %c0_13], %13 {strides = array<i32>} : memref<32x128xbf16, #tpu.memory_space<vmem>>, vector<32x128xbf16>,
    return
  }
  func.func @transform_0(%arg0: i32) -> (i32, i32) {
    %c0_i32 = arith.constant 0 : i32
    %c0_i32_0 = arith.constant 0 : i32
    return %arg0, %c0_i32 : i32, i32
  }
  func.func @transform_1(%arg0: i32) -> (i32, i32) {
    %c0_i32 = arith.constant 0 : i32
    %c0_i32_0 = arith.constant 0 : i32
    return %arg0, %c0_i32 : i32, i32
  }
  func.func @transform_2(%arg0: i32) -> (i32, i32) {
    %c0_i32 = arith.constant 0 : i32
    %c0_i32_0 = arith.constant 0 : i32
    %c0_i32_1 = arith.constant 0 : i32
    return %c0_i32, %c0_i32_0 : i32, i32
  }
  func.func @transform_3(%arg0: i32) -> (i32, i32) {
    %c0_i32 = arith.constant 0 : i32
    %c0_i32_0 = arith.constant 0 : i32
    %c0_i32_1 = arith.constant 0 : i32
    return %c0_i32, %c0_i32_0 : i32, i32
  }
  func.func @transform_4(%arg0: i32) -> (i32, i32) {
    %c0_i32 = arith.constant 0 : i32
    %c0_i32_0 = arith.constant 0 : i32
    %c0_i32_1 = arith.constant 0 : i32
    return %c0_i32, %c0_i32_0 : i32, i32
  }
  func.func @transform_5(%arg0: i32) -> (i32, i32) {
    %c0_i32 = arith.constant 0 : i32
    %c0_i32_0 = arith.constant 0 : i32
    return %arg0, %c0_i32 : i32, i32
  }
}

</mosaic_0001>

<llo_original>
// kernel: gnn_forward.8
$region0: #{gnn_forward.8}
  #allocation0 [shape = 'u32[]', space=smem, size = 0x4, offset = 0x4, fixed_abs, tag = 'smem constant byte address 0x4 - core index']
  #allocation1 [shape = 'u32[72,128]{1,0:T(1,128)}', space=vmem, size = 0x9000, scoped, tag = 'internal scratch']
  #allocation2 [shape = 'f32[32,128]{1,0:T(8,128)}', space=vmem, size = 0x4000, scoped, tag = 'scratch operand']
  %s0 = inlined_call_operand.vmem [shape: bf16[32,32], index: 0, kind: input, shape index: {}]
  %s1 = inlined_call_operand.vmem [shape: bf16[32,128], index: 1, kind: input, shape index: {}]
  %s2 = inlined_call_operand.vmem [shape: f32[1,128], index: 2, kind: input, shape index: {}]
  %s3 = inlined_call_operand.vmem [shape: f32[8,32], index: 3, kind: input, shape index: {}]
  %s4 = inlined_call_operand.vmem [shape: f32[32,128], index: 4, kind: output, shape index: {0}]
  %s5 = inlined_call_operand.vmem [shape: f32[1,8,256], index: 5, kind: output, shape index: {1}]
  %6 = xla_tuple %s4, %s5
  %s7 = sld [smem:[#allocation0]]
  $region42: #{gnn_forward.8} parent=0
    _
  %s9 = ssub.s32 1, %s7
  %s10 = scalar_select 0, %s9, %s7
  // Predicated region
  $region2: #{gnn_forward.8} parent=0 // pred_check
    _
  $region3: #{gnn_forward.8} parent=0 // pred_check_branch
    %12 = sbr.rel (0) target = $region5
  $region4: #{gnn_forward.8} parent=0 // pred_region
    _
  $region5: #{gnn_forward.8} parent=0 // pred_fallthru
    _
  // Predicated region
  $region6: #{gnn_forward.8} parent=0 // pred_check
    _
  $region7: #{gnn_forward.8} parent=0 // pred_check_branch
    %14 = sbr.rel (0) target = $region9
  $region8: #{gnn_forward.8} parent=0 // pred_region
    _
  $region9: #{gnn_forward.8} parent=0 // pred_fallthru
    _
  // Predicated region
  $region10: #{gnn_forward.8} parent=0 // pred_check
    _
  $region11: #{gnn_forward.8} parent=0 // pred_check_branch
    %16 = sbr.rel (0) target = $region13
  $region12: #{gnn_forward.8} parent=0 // pred_region
    _
  $region13: #{gnn_forward.8} parent=0 // pred_fallthru
    _
  // Predicated region
  $region14: #{gnn_forward.8} parent=0 // pred_check
    _
  $region15: #{gnn_forward.8} parent=0 // pred_check_branch
    %18 = sbr.rel (0) target = $region17
  $region16: #{gnn_forward.8} parent=0 // pred_region
    _
  $region17: #{gnn_forward.8} parent=0 // pred_fallthru
    _
  %p20 = scmp.eq.s32.totalorder 0, 0
  // Predicated region
  $region18: #{gnn_forward.8} parent=0 // pred_check
    %p21 = pneg %p20
  $region19: #{gnn_forward.8} parent=0 // pred_check_branch
    %23 = sbr.rel (%p21) target = $region21
  $region20: #{gnn_forward.8} parent=0 // pred_region
    %24 = vst [vmem:[#allocation2] sm:$0xff] 0.0
    %25 = vst [vmem:[#allocation2 + $0x8] sm:$0xff] 0.0
    %26 = vst [vmem:[#allocation2 + $0x10] sm:$0xff] 0.0
    %27 = vst [vmem:[#allocation2 + $0x18] sm:$0xff] 0.0
  $region21: #{gnn_forward.8} parent=0 // pred_fallthru
    _
  %v28 = vld [vmem:[#allocation2] sm:$0xff]
  %v29 = vld [vmem:[#allocation2 + $0x8] sm:$0xff]
  %v30 = vld [vmem:[#allocation2 + $0x10] sm:$0xff]
  %v31 = vld [vmem:[#allocation2 + $0x18] sm:$0xff]
  %v32 = vld [vmem:[%s0] sm:$0xf]
  %v33 = vld [vmem:[%s0 + $0x4] sm:$0xf]
  %v34 = vld [vmem:[%s0 + $0x8] sm:$0xf]
  %v35 = vld [vmem:[%s0 + $0xc] sm:$0xf]
  %v36 = vld [vmem:[%s1] sm:$0xf]
  %v37 = vld [vmem:[%s1 + $0x4] sm:$0xf]
  %v38 = vld [vmem:[%s1 + $0x8] sm:$0xf]
  %v39 = vld [vmem:[%s1 + $0xc] sm:$0xf]
  %v44 = vunpack.c.l.b16 %v32
  %v45 = vunpack.c.l.b16 %v33
  %v46 = vunpack.c.l.b16 %v34
  %v47 = vunpack.c.l.b16 %v35
  %v48 = vpack.c.b16 %v45, %v44
  %v49 = vpack.c.b16 %v47, %v46
  %v54 = vunpack.c.l.b16 %v36
  %v55 = vunpack.c.l.b16 %v37
  %v56 = vunpack.c.l.b16 %v38
  %v57 = vunpack.c.l.b16 %v39
  %v58 = vpack.c.b16 %v55, %v54
  %v59 = vpack.c.b16 %v57, %v56
  %vm62 = vcmask 261120
  %v64 = vsel %vm62, %v48, 0
  %v67 = vsel %vm62, %v49, 0
  %69 = vmatpush.bf16.msra.mxu0 0
  %70 = vmatpush.bf16.msra.mxu0 0
  %71 = vmatpush.bf16.msra.mxu0 0
  %72 = vmatpush.bf16.msra.mxu0 0
  %73 = vmatpush.bf16.msra.mxu0 0
  %74 = vmatpush.bf16.msra.mxu0 0
  %75 = vmatpush.bf16.msra.mxu0 %v59
  %76 = vmatpush.bf16.msra.mxu0 %v58
  %77 = vmatmul.bf16.gmra.mxu0 %v64
  %v78 = vpop.f32.mrf.mxu0
  %v79 = vadd.f32 0.0, %v78
  %v80 = vpop.f32.mrf.mxu0
  %v81 = vadd.f32 0.0, %v80
  %82 = vmatmul.bf16.gmra.mxu0 %v67
  %v83 = vpop.f32.mrf.mxu0
  %v84 = vadd.f32 0.0, %v83
  %v85 = vpop.f32.mrf.mxu0
  %v86 = vadd.f32 0.0, %v85
  %87 = vdwg.mxu0
  %v88 = vadd.f32 %v28, %v79
  %v89 = vadd.f32 %v29, %v81
  %v90 = vadd.f32 %v30, %v84
  %v91 = vadd.f32 %v31, %v86
  %92 = vst [vmem:[#allocation2] sm:$0xff] %v88
  %93 = vst [vmem:[#allocation2 + $0x8] sm:$0xff] %v89
  %94 = vst [vmem:[#allocation2 + $0x10] sm:$0xff] %v90
  %95 = vst [vmem:[#allocation2 + $0x18] sm:$0xff] %v91
  // Predicated region
  $region22: #{gnn_forward.8} parent=0 // pred_check
    %p96 = pneg %p20
  $region23: #{gnn_forward.8} parent=0 // pred_check_branch
    %98 = sbr.rel (%p96) target = $region25
  $region24: #{gnn_forward.8} parent=0 // pred_region
    %v99 = vld [vmem:[#allocation2] sm:$0xff]
    %v100 = vld [vmem:[#allocation2 + $0x8] sm:$0xff]
    %v101 = vld [vmem:[#allocation2 + $0x10] sm:$0xff]
    %v102 = vld [vmem:[#allocation2 + $0x18] sm:$0xff]
    %v103 = vld [vmem:[%s2] sm:$0x1]
    %v105 = vperm.slane %v103, 0
    %v107 = vadd.f32 %v99, %v105
    %v108 = vadd.f32 %v100, %v105
    %v109 = vadd.f32 %v101, %v105
    %v110 = vadd.f32 %v102, %v105
    %111 = vst [vmem:[%s4] sm:$0xff] %v107
    %112 = vst [vmem:[%s4 + $0x8] sm:$0xff] %v108
    %113 = vst [vmem:[%s4 + $0x10] sm:$0xff] %v109
    %114 = vst [vmem:[%s4 + $0x18] sm:$0xff] %v110
    %v115 = vld [vmem:[%s3] sm:$0xff]
    %v117 = vsel %vm62, %v115, 0
    %119 = vmatpush.msra.mxu0 0.0
    %120 = vmatpush.msra.mxu0 0.0
    %121 = vmatpush.msra.mxu0 0.0
    %122 = vmatpush.msra.mxu0 0.0
    %123 = vmatpush.msra.mxu0 0.0
    %124 = vmatpush.msra.mxu0 0.0
    %125 = vmatpush.msra.mxu0 0.0
    %126 = vmatpush.msra.mxu0 0.0
    %127 = vmatpush.msra.mxu0 0.0
    %128 = vmatpush.msra.mxu0 0.0
    %129 = vmatpush.msra.mxu0 0.0
    %130 = vmatpush.msra.mxu0 0.0
    %131 = vmatpush.msra.mxu0 %v110
    %132 = vmatpush.msra.mxu0 %v109
    %133 = vmatpush.msra.mxu0 %v108
    %134 = vmatpush.msra.mxu0 %v107
    %135 = vmatmul.f32.gmra.mxu0 %v117
    %v136 = vpop.f32.mrf.mxu0
    %v137 = vadd.f32 0.0, %v136
    %138 = vdwg.mxu0
    %139 = vst [vmem:[%s5] sm:$0xff] %v137
    %v140 = vmul.f32 %v107, %v107
    %v141 = vmul.f32 %v108, %v108
    %v142 = vmul.f32 %v109, %v109
    %v143 = vmul.f32 %v110, %v110
    %144 = vmatpush.msra.mxu0 0.0
    %145 = vmatpush.msra.mxu0 0.0
    %146 = vmatpush.msra.mxu0 0.0
    %147 = vmatpush.msra.mxu0 0.0
    %148 = vmatpush.msra.mxu0 0.0
    %149 = vmatpush.msra.mxu0 0.0
    %150 = vmatpush.msra.mxu0 0.0
    %151 = vmatpush.msra.mxu0 0.0
    %152 = vmatpush.msra.mxu0 0.0
    %153 = vmatpush.msra.mxu0 0.0
    %154 = vmatpush.msra.mxu0 0.0
    %155 = vmatpush.msra.mxu0 0.0
    %156 = vmatpush.msra.mxu0 %v143
    %157 = vmatpush.msra.mxu0 %v142
    %158 = vmatpush.msra.mxu0 %v141
    %159 = vmatpush.msra.mxu0 %v140
    %160 = vmatmul.f32.gmra.mxu0 %v117
    %v161 = vpop.f32.mrf.mxu0
    %v162 = vadd.f32 0.0, %v161
    %163 = vdwg.mxu0
    %164 = vst [vmem:[%s5 + $0x8] sm:$0xff] %v162
  $region25: #{gnn_forward.8} parent=0 // pred_fallthru
    _
  // Predicated region
  $region26: #{gnn_forward.8} parent=0 // pred_check
    _
  $region27: #{gnn_forward.8} parent=0 // pred_check_branch
    %166 = sbr.rel (0) target = $region29
  $region28: #{gnn_forward.8} parent=0 // pred_region
    _
  $region29: #{gnn_forward.8} parent=0 // pred_fallthru
    _
  // Predicated region
  $region30: #{gnn_forward.8} parent=0 // pred_check
    _
  $region31: #{gnn_forward.8} parent=0 // pred_check_branch
    %168 = sbr.rel (0) target = $region33
  $region32: #{gnn_forward.8} parent=0 // pred_region
    _
  $region33: #{gnn_forward.8} parent=0 // pred_fallthru
    _
  // Predicated region
  $region34: #{gnn_forward.8} parent=0 // pred_check
    _
  $region35: #{gnn_forward.8} parent=0 // pred_check_branch
    %170 = sbr.rel (0) target = $region37
  $region36: #{gnn_forward.8} parent=0 // pred_region
    _
  $region37: #{gnn_forward.8} parent=0 // pred_fallthru
    _
  // Predicated region
  $region38: #{gnn_forward.8} parent=0 // pred_check
    _
  $region39: #{gnn_forward.8} parent=0 // pred_check_branch
    %172 = sbr.rel (0) target = $region41
  $region40: #{gnn_forward.8} parent=0 // pred_region
    _
  $region41: #{gnn_forward.8} parent=0 // pred_fallthru
    _

// kernel: gnn_forward.15
$region0: #{gnn_forward.15}
  #allocation0 [shape = 'u32[]', space=smem, size = 0x4, offset = 0x4, fixed_abs, tag = 'smem constant byte address 0x4 - core index']
  #allocation1 [shape = 'u32[72,128]{1,0:T(1,128)}', space=vmem, size = 0x9000, scoped, tag = 'internal scratch']
  %s0 = inlined_call_operand.vmem [shape: f32[32,128], index: 0, kind: input, shape index: {}]
  %s1 = inlined_call_operand.vmem [shape: f32[32,8], index: 1, kind: input, shape index: {}]
  %s2 = inlined_call_operand.vmem [shape: f32[8,128], index: 2, kind: input, shape index: {}]
  %s3 = inlined_call_operand.vmem [shape: f32[8,128], index: 3, kind: input, shape index: {}]
  %s4 = inlined_call_operand.hbm [shape: f32[32,128], index: 4, kind: output, shape index: {}]
  %s5 = sld [smem:[#allocation0]]
  $region26: #{gnn_forward.15} parent=0
    _
  %s7 = ssub.s32 1, %s5
  %s8 = scalar_select 0, %s7, %s5
  $region1: #{gnn_forward.15} parent=0
    #allocation2 [shape = 'u8[16384]{0}', space=vmem, size = 0x4000, scoped, tag = 'output window, operand 0, single buffered']
    #allocation3 [shape = 's32[1]{0}', space=sflag, size = 0x4, scoped, tag = 'scoped memory for gnn_forward.15']
    %9 = vsyncpa [#allocation3], 0
    // Predicated region
    $region2: #{gnn_forward.15} parent=1 // pred_check
      _
    $region3: #{gnn_forward.15} parent=1 // pred_check_branch
      %11 = sbr.rel (0) target = $region5
    $region4: #{gnn_forward.15} parent=1 // pred_region
      _
    $region5: #{gnn_forward.15} parent=1 // pred_fallthru
      _
    // Predicated region
    $region6: #{gnn_forward.15} parent=1 // pred_check
      _
    $region7: #{gnn_forward.15} parent=1 // pred_check_branch
      %13 = sbr.rel (0) target = $region9
    $region8: #{gnn_forward.15} parent=1 // pred_region
      _
    $region9: #{gnn_forward.15} parent=1 // pred_fallthru
      _
    // Predicated region
    $region10: #{gnn_forward.15} parent=1 // pred_check
      _
    $region11: #{gnn_forward.15} parent=1 // pred_check_branch
      %15 = sbr.rel (0) target = $region13
    $region12: #{gnn_forward.15} parent=1 // pred_region
      _
    $region13: #{gnn_forward.15} parent=1 // pred_fallthru
      _
    // Predicated region
    $region14: #{gnn_forward.15} parent=1 // pred_check
      _
    $region15: #{gnn_forward.15} parent=1 // pred_check_branch
      %17 = sbr.rel (0) target = $region17
    $region16: #{gnn_forward.15} parent=1 // pred_region
      _
    $region17: #{gnn_forward.15} parent=1 // pred_fallthru
      _
    %v18 = vld [vmem:[%s1] sm:$0xff]
    %v19 = vld [vmem:[%s1 + $0x8] sm:$0xff]
    %v20 = vld [vmem:[%s1 + $0x10] sm:$0xff]
    %v21 = vld [vmem:[%s1 + $0x18] sm:$0xff]
    %v22 = vld [vmem:[%s2] sm:$0xff]
    %vm23 = vcmask 64512
    %v25 = vsel %vm23, %v18, 0
    %v28 = vsel %vm23, %v19, 0
    %v31 = vsel %vm23, %v20, 0
    %v34 = vsel %vm23, %v21, 0
    %36 = vmatpush.msra.mxu0 0.0
    %37 = vmatpush.msra.mxu0 0.0
    %38 = vmatpush.msra.mxu0 0.0
    %39 = vmatpush.msra.mxu0 0.0
    %40 = vmatpush.msra.mxu0 0.0
    %41 = vmatpush.msra.mxu0 0.0
    %42 = vmatpush.msra.mxu0 0.0
    %43 = vmatpush.msra.mxu0 0.0
    %44 = vmatpush.msra.mxu0 0.0
    %45 = vmatpush.msra.mxu0 0.0
    %46 = vmatpush.msra.mxu0 0.0
    %47 = vmatpush.msra.mxu0 0.0
    %48 = vmatpush.msra.mxu0 0.0
    %49 = vmatpush.msra.mxu0 0.0
    %50 = vmatpush.msra.mxu0 0.0
    %51 = vmatpush.msra.mxu0 %v22
    %52 = vmatmul.f32.gmra.mxu0 %v25
    %v53 = vpop.f32.mrf.mxu0
    %v54 = vadd.f32 0.0, %v53
    %55 = vmatmul.f32.gmra.mxu0 %v28
    %v56 = vpop.f32.mrf.mxu0
    %v57 = vadd.f32 0.0, %v56
    %58 = vmatmul.f32.gmra.mxu0 %v31
    %v59 = vpop.f32.mrf.mxu0
    %v60 = vadd.f32 0.0, %v59
    %61 = vmatmul.f32.gmra.mxu0 %v34
    %v62 = vpop.f32.mrf.mxu0
    %v63 = vadd.f32 0.0, %v62
    %64 = vdwg.mxu0
    %v65 = vld [vmem:[%s3] sm:$0xff]
    %66 = vmatpush.msra.mxu0 0.0
    %67 = vmatpush.msra.mxu0 0.0
    %68 = vmatpush.msra.mxu0 0.0
    %69 = vmatpush.msra.mxu0 0.0
    %70 = vmatpush.msra.mxu0 0.0
    %71 = vmatpush.msra.mxu0 0.0
    %72 = vmatpush.msra.mxu0 0.0
    %73 = vmatpush.msra.mxu0 0.0
    %74 = vmatpush.msra.mxu0 0.0
    %75 = vmatpush.msra.mxu0 0.0
    %76 = vmatpush.msra.mxu0 0.0
    %77 = vmatpush.msra.mxu0 0.0
    %78 = vmatpush.msra.mxu0 0.0
    %79 = vmatpush.msra.mxu0 0.0
    %80 = vmatpush.msra.mxu0 0.0
    %81 = vmatpush.msra.mxu0 %v65
    %82 = vmatmul.f32.gmra.mxu0 %v25
    %v83 = vpop.f32.mrf.mxu0
    %v84 = vadd.f32 0.0, %v83
    %85 = vmatmul.f32.gmra.mxu0 %v28
    %v86 = vpop.f32.mrf.mxu0
    %v87 = vadd.f32 0.0, %v86
    %88 = vmatmul.f32.gmra.mxu0 %v31
    %v89 = vpop.f32.mrf.mxu0
    %v90 = vadd.f32 0.0, %v89
    %91 = vmatmul.f32.gmra.mxu0 %v34
    %v92 = vpop.f32.mrf.mxu0
    %v93 = vadd.f32 0.0, %v92
    %94 = vdwg.mxu0
    %v95 = vld [vmem:[%s0] sm:$0xff]
    %v96 = vld [vmem:[%s0 + $0x8] sm:$0xff]
    %v97 = vld [vmem:[%s0 + $0x10] sm:$0xff]
    %v98 = vld [vmem:[%s0 + $0x18] sm:$0xff]
    %v99 = vmul.f32 %v95, %v54
    %v100 = vmul.f32 %v96, %v57
    %v101 = vmul.f32 %v97, %v60
    %v102 = vmul.f32 %v98, %v63
    %v103 = vadd.f32 %v99, %v84
    %v104 = vadd.f32 %v100, %v87
    %v105 = vadd.f32 %v101, %v90
    %v106 = vadd.f32 %v102, %v93
    %v107 = vmax.f32 %v103, 0.0
    %v108 = vmax.f32 %v104, 0.0
    %v109 = vmax.f32 %v105, 0.0
    %v110 = vmax.f32 %v106, 0.0
    %111 = vst [vmem:[#allocation2] sm:$0xff] %v107
    %112 = vst [vmem:[#allocation2 + $0x8] sm:$0xff] %v108
    %113 = vst [vmem:[#allocation2 + $0x10] sm:$0xff] %v109
    %114 = vst [vmem:[#allocation2 + $0x18] sm:$0xff] %v110
    // Predicated region
    $region18: #{gnn_forward.15} parent=1 // pred_check
      _
    $region19: #{gnn_forward.15} parent=1 // pred_check_branch
      %116 = sbr.rel (0) target = $region21
    $region20: #{gnn_forward.15} parent=1 // pred_region
      %118 = vsyncadd [#allocation3], 0
      %s119 = sshll.u32 [#allocation2], 4
      %s120 = int_to_ptr.vmem [resolvable:$true] %s119
      %s121 = sshll.u32 %s4, 4
      %s122 = int_to_ptr.hbm [resolvable:$true] %s121
      %127 = dma.vmem_to_hbm [thread:$0]  %s120, 512, %s122, [#allocation3], 128, 128, 8
    $region21: #{gnn_forward.15} parent=1 // pred_fallthru
      _
    // Predicated region
    $region22: #{gnn_forward.15} parent=1 // pred_check
      _
    $region23: #{gnn_forward.15} parent=1 // pred_check_branch
      %129 = sbr.rel (0) target = $region25
    $region24: #{gnn_forward.15} parent=1 // pred_region
      %131 = dma.done [#allocation3], 512
    $region25: #{gnn_forward.15} parent=1 // pred_fallthru
      _
    %132 = vsyncpa [#allocation3], 1

// kernel: gnn_forward.9
$region0: #{gnn_forward.9}
  #allocation0 [shape = 'u32[]', space=smem, size = 0x4, offset = 0x4, fixed_abs, tag = 'smem constant byte address 0x4 - core index']
  #allocation1 [shape = 'u32[72,128]{1,0:T(1,128)}', space=vmem, size = 0x9000, scoped, tag = 'internal scratch']
  %s0 = inlined_call_operand.vmem [shape: f32[32,128], index: 0, kind: input, shape index: {}]
  %s1 = inlined_call_operand.vmem [shape: f32[32,8], index: 1, kind: input, shape index: {}]
  %s2 = inlined_call_operand.vmem [shape: f32[8,128], index: 2, kind: input, shape index: {}]
  %s3 = inlined_call_operand.vmem [shape: f32[8,128], index: 3, kind: input, shape index: {}]
  %s4 = inlined_call_operand.vmem [shape: bf16[128,128], index: 4, kind: input, shape index: {}]
  %s5 = inlined_call_operand.vmem [shape: bf16[32,128], index: 5, kind: output, shape index: {}]
  %s6 = sld [smem:[#allocation0]]
  $region30: #{gnn_forward.9} parent=0
    _
  %s8 = ssub.s32 1, %s6
  %s9 = scalar_select 0, %s8, %s6
  // Predicated region
  $region2: #{gnn_forward.9} parent=0 // pred_check
    _
  $region3: #{gnn_forward.9} parent=0 // pred_check_branch
    %11 = sbr.rel (0) target = $region5
  $region4: #{gnn_forward.9} parent=0 // pred_region
    _
  $region5: #{gnn_forward.9} parent=0 // pred_fallthru
    _
  // Predicated region
  $region6: #{gnn_forward.9} parent=0 // pred_check
    _
  $region7: #{gnn_forward.9} parent=0 // pred_check_branch
    %13 = sbr.rel (0) target = $region9
  $region8: #{gnn_forward.9} parent=0 // pred_region
    _
  $region9: #{gnn_forward.9} parent=0 // pred_fallthru
    _
  // Predicated region
  $region10: #{gnn_forward.9} parent=0 // pred_check
    _
  $region11: #{gnn_forward.9} parent=0 // pred_check_branch
    %15 = sbr.rel (0) target = $region13
  $region12: #{gnn_forward.9} parent=0 // pred_region
    _
  $region13: #{gnn_forward.9} parent=0 // pred_fallthru
    _
  // Predicated region
  $region14: #{gnn_forward.9} parent=0 // pred_check
    _
  $region15: #{gnn_forward.9} parent=0 // pred_check_branch
    %17 = sbr.rel (0) target = $region17
  $region16: #{gnn_forward.9} parent=0 // pred_region
    _
  $region17: #{gnn_forward.9} parent=0 // pred_fallthru
    _
  // Predicated region
  $region18: #{gnn_forward.9} parent=0 // pred_check
    _
  $region19: #{gnn_forward.9} parent=0 // pred_check_branch
    %19 = sbr.rel (0) target = $region21
  $region20: #{gnn_forward.9} parent=0 // pred_region
    _
  $region21: #{gnn_forward.9} parent=0 // pred_fallthru
    _
  %v20 = vld [vmem:[%s1] sm:$0xff]
  %v21 = vld [vmem:[%s1 + $0x8] sm:$0xff]
  %v22 = vld [vmem:[%s1 + $0x10] sm:$0xff]
  %v23 = vld [vmem:[%s1 + $0x18] sm:$0xff]
  %v24 = vld [vmem:[%s2] sm:$0xff]
  %vm25 = vcmask 64512
  %v27 = vsel %vm25, %v20, 0
  %v30 = vsel %vm25, %v21, 0
  %v33 = vsel %vm25, %v22, 0
  %v36 = vsel %vm25, %v23, 0
  %38 = vmatpush.msra.mxu0 0.0
  %39 = vmatpush.msra.mxu0 0.0
  %40 = vmatpush.msra.mxu0 0.0
  %41 = vmatpush.msra.mxu0 0.0
  %42 = vmatpush.msra.mxu0 0.0
  %43 = vmatpush.msra.mxu0 0.0
  %44 = vmatpush.msra.mxu0 0.0
  %45 = vmatpush.msra.mxu0 0.0
  %46 = vmatpush.msra.mxu0 0.0
  %47 = vmatpush.msra.mxu0 0.0
  %48 = vmatpush.msra.mxu0 0.0
  %49 = vmatpush.msra.mxu0 0.0
  %50 = vmatpush.msra.mxu0 0.0
  %51 = vmatpush.msra.mxu0 0.0
  %52 = vmatpush.msra.mxu0 0.0
  %53 = vmatpush.msra.mxu0 %v24
  %54 = vmatmul.f32.gmra.mxu0 %v27
  %v55 = vpop.f32.mrf.mxu0
  %v56 = vadd.f32 0.0, %v55
  %57 = vmatmul.f32.gmra.mxu0 %v30
  %v58 = vpop.f32.mrf.mxu0
  %v59 = vadd.f32 0.0, %v58
  %60 = vmatmul.f32.gmra.mxu0 %v33
  %v61 = vpop.f32.mrf.mxu0
  %v62 = vadd.f32 0.0, %v61
  %63 = vmatmul.f32.gmra.mxu0 %v36
  %v64 = vpop.f32.mrf.mxu0
  %v65 = vadd.f32 0.0, %v64
  %66 = vdwg.mxu0
  %v67 = vld [vmem:[%s3] sm:$0xff]
  %68 = vmatpush.msra.mxu0 0.0
  %69 = vmatpush.msra.mxu0 0.0
  %70 = vmatpush.msra.mxu0 0.0
  %71 = vmatpush.msra.mxu0 0.0
  %72 = vmatpush.msra.mxu0 0.0
  %73 = vmatpush.msra.mxu0 0.0
  %74 = vmatpush.msra.mxu0 0.0
  %75 = vmatpush.msra.mxu0 0.0
  %76 = vmatpush.msra.mxu0 0.0
  %77 = vmatpush.msra.mxu0 0.0
  %78 = vmatpush.msra.mxu0 0.0
  %79 = vmatpush.msra.mxu0 0.0
  %80 = vmatpush.msra.mxu0 0.0
  %81 = vmatpush.msra.mxu0 0.0
  %82 = vmatpush.msra.mxu0 0.0
  %83 = vmatpush.msra.mxu0 %v67
  %84 = vmatmul.f32.gmra.mxu0 %v27
  %v85 = vpop.f32.mrf.mxu0
  %v86 = vadd.f32 0.0, %v85
  %87 = vmatmul.f32.gmra.mxu0 %v30
  %v88 = vpop.f32.mrf.mxu0
  %v89 = vadd.f32 0.0, %v88
  %90 = vmatmul.f32.gmra.mxu0 %v33
  %v91 = vpop.f32.mrf.mxu0
  %v92 = vadd.f32 0.0, %v91
  %93 = vmatmul.f32.gmra.mxu0 %v36
  %v94 = vpop.f32.mrf.mxu0
  %v95 = vadd.f32 0.0, %v94
  %96 = vdwg.mxu0
  %v97 = vld [vmem:[%s0] sm:$0xff]
  %v98 = vld [vmem:[%s0 + $0x8] sm:$0xff]
  %v99 = vld [vmem:[%s0 + $0x10] sm:$0xff]
  %v100 = vld [vmem:[%s0 + $0x18] sm:$0xff]
  %v101 = vmul.f32 %v97, %v56
  %v102 = vmul.f32 %v98, %v59
  %v103 = vmul.f32 %v99, %v62
  %v104 = vmul.f32 %v100, %v65
  %v105 = vadd.f32 %v101, %v86
  %v106 = vadd.f32 %v102, %v89
  %v107 = vadd.f32 %v103, %v92
  %v108 = vadd.f32 %v104, %v95
  %v109 = vmax.f32 %v105, 0.0
  %v110 = vmax.f32 %v106, 0.0
  %v111 = vmax.f32 %v107, 0.0
  %v112 = vmax.f32 %v108, 0.0
  %v113 = vpack.c.bf16 %v110, %v109
  %v114 = vpack.c.bf16 %v112, %v111
  %v115 = vld [vmem:[%s4] sm:$0xf]
  %v116 = vld [vmem:[%s4 + $0x4] sm:$0xf]
  %v117 = vld [vmem:[%s4 + $0x8] sm:$0xf]
  %v118 = vld [vmem:[%s4 + $0xc] sm:$0xf]
  %v119 = vld [vmem:[%s4 + $0x10] sm:$0xf]
  %v120 = vld [vmem:[%s4 + $0x14] sm:$0xf]
  %v121 = vld [vmem:[%s4 + $0x18] sm:$0xf]
  %v122 = vld [vmem:[%s4 + $0x1c] sm:$0xf]
  %v123 = vld [vmem:[%s4 + $0x20] sm:$0xf]
  %v124 = vld [vmem:[%s4 + $0x24] sm:$0xf]
  %v125 = vld [vmem:[%s4 + $0x28] sm:$0xf]
  %v126 = vld [vmem:[%s4 + $0x2c] sm:$0xf]
  %v127 = vld [vmem:[%s4 + $0x30] sm:$0xf]
  %v128 = vld [vmem:[%s4 + $0x34] sm:$0xf]
  %v129 = vld [vmem:[%s4 + $0x38] sm:$0xf]
  %v130 = vld [vmem:[%s4 + $0x3c] sm:$0xf]
  %v147 = vunpack.c.l.b16 %v115
  %v148 = vunpack.c.l.b16 %v116
  %v149 = vunpack.c.l.b16 %v117
  %v150 = vunpack.c.l.b16 %v118
  %v151 = vunpack.c.l.b16 %v119
  %v152 = vunpack.c.l.b16 %v120
  %v153 = vunpack.c.l.b16 %v121
  %v154 = vunpack.c.l.b16 %v122
  %v155 = vunpack.c.l.b16 %v123
  %v156 = vunpack.c.l.b16 %v124
  %v157 = vunpack.c.l.b16 %v125
  %v158 = vunpack.c.l.b16 %v126
  %v159 = vunpack.c.l.b16 %v127
  %v160 = vunpack.c.l.b16 %v128
  %v161 = vunpack.c.l.b16 %v129
  %v162 = vunpack.c.l.b16 %v130
  %v163 = vpack.c.b16 %v148, %v147
  %v164 = vpack.c.b16 %v150, %v149
  %v165 = vpack.c.b16 %v152, %v151
  %v166 = vpack.c.b16 %v154, %v153
  %v167 = vpack.c.b16 %v156, %v155
  %v168 = vpack.c.b16 %v158, %v157
  %v169 = vpack.c.b16 %v160, %v159
  %v170 = vpack.c.b16 %v162, %v161
  %179 = vmatpush.bf16.msra.mxu0 %v170
  %180 = vmatpush.bf16.msra.mxu0 %v169
  %181 = vmatpush.bf16.msra.mxu0 %v168
  %182 = vmatpush.bf16.msra.mxu0 %v167
  %183 = vmatpush.bf16.msra.mxu0 %v166
  %184 = vmatpush.bf16.msra.mxu0 %v165
  %185 = vmatpush.bf16.msra.mxu0 %v164
  %186 = vmatpush.bf16.msra.mxu0 %v163
  %187 = vmatmul.bf16.gmra.mxu0 %v113
  %v188 = vpop.f32.mrf.mxu0
  %v189 = vadd.f32 0.0, %v188
  %v190 = vpop.f32.mrf.mxu0
  %v191 = vadd.f32 0.0, %v190
  %192 = vmatmul.bf16.gmra.mxu0 %v114
  %v193 = vpop.f32.mrf.mxu0
  %v194 = vadd.f32 0.0, %v193
  %v195 = vpop.f32.mrf.mxu0
  %v196 = vadd.f32 0.0, %v195
  %197 = vdwg.mxu0
  %v198 = vpack.c.bf16 %v189, %v189
  %v199 = vpack.c.bf16 %v191, %v191
  %v200 = vpack.c.bf16 %v194, %v194
  %v201 = vpack.c.bf16 %v196, %v196
  %202 = vst [vmem:[%s5] sm:$0xf] %v198
  %203 = vst [vmem:[%s5 + $0x4] sm:$0xf] %v199
  %204 = vst [vmem:[%s5 + $0x8] sm:$0xf] %v200
  %205 = vst [vmem:[%s5 + $0xc] sm:$0xf] %v201
  // Predicated region
  $region22: #{gnn_forward.9} parent=0 // pred_check
    _
  $region23: #{gnn_forward.9} parent=0 // pred_check_branch
    %207 = sbr.rel (0) target = $region25
  $region24: #{gnn_forward.9} parent=0 // pred_region
    _
  $region25: #{gnn_forward.9} parent=0 // pred_fallthru
    _
  // Predicated region
  $region26: #{gnn_forward.9} parent=0 // pred_check
    _
  $region27: #{gnn_forward.9} parent=0 // pred_check_branch
    %209 = sbr.rel (0) target = $region29
  $region28: #{gnn_forward.9} parent=0 // pred_region
    _
  $region29: #{gnn_forward.9} parent=0 // pred_fallthru
    _

</llo_original>
